<compile_context>
chip_gen: v7x
topology: tpu7x:2x2x1
jax: 0.10.0
libtpu: 0.0.40
codegen_flags: <defaults>
</compile_context>

<pallas_src>
import functools
import math

import jax
import jax.numpy as jnp
from jax.experimental import pallas as pl
from jax.experimental.pallas import tpu as pltpu


_MAX_GROUP_ROWS = 64        # cap on the static per-group unroll


def _round_up(x, m):
    return ((x + m - 1) // m) * m


def _next_pow2(x):
    return 1 if x <= 1 else 1 << (x - 1).bit_length()


# ----------------------------------------------------------------------------
# Pallas kernel: one grid step = one (level, rule) group of tree nodes.
# ----------------------------------------------------------------------------
def _tree_encode_kernel(gid_ref, base_ref, child_ref,        # SMEM (prefetch)
                        w_hbm_ref, b_hbm_ref,                 # HBM (pl.ANY)
                        table_ref,                            # VMEM out (resident)
                        w_ref, b_ref, gat_ref, dma_sems):     # scratch
    # gid_ref   : (n_groups,)               rule id per group
    # base_ref  : (n_groups,)               first table row of the group block
    # child_ref : (n_groups*g_pad*max_m,)   child rows (0 = reserved zero row)
    # w_hbm_ref : (r_pad, max_m*dim, dim)   flattened rule weights (bf16, HBM)
    # b_hbm_ref : (r_pad, dim)              rule biases (f32, HBM)
    # table_ref : (s_pad, dim)              encoding table, VMEM-resident output
    # w_ref/b_ref: single-buffered VMEM staging of the weights/biases
    # gat_ref   : (g_pad, max_m*dim)        gathered child rows for this group
    g = pl.program_id(0)
    dim = table_ref.shape[1]
    g_pad = gat_ref.shape[0]
    max_m = gat_ref.shape[1] // dim

    @pl.when(g == 0)
    def _init():
        # One-time: zero the resident table (row 0 is the reserved always-zero
        # row read by leaf / padded child positions) and stage the
        # grid-invariant weights into single-buffered VMEM scratch.
        table_ref[...] = jnp.zeros_like(table_ref)
        w_cp = pltpu.make_async_copy(w_hbm_ref, w_ref, dma_sems.at[0])
        b_cp = pltpu.make_async_copy(b_hbm_ref, b_ref, dma_sems.at[1])
        w_cp.start()
        b_cp.start()
        w_cp.wait()
        b_cp.wait()

    gid = gid_ref[g]                          # rule used by every node in group
    base = pl.multiple_of(base_ref[g], 8)     # group rows are 8-aligned slabs

    # Gather the group's child rows into one sublane/lane-dense slab.
    # Padded child positions / leaf rules point at the reserved zero row 0.
    for i in range(g_pad):                    # static unroll (g_pad <= 64)
        for c in range(max_m):
            s = child_ref[(g * g_pad + i) * max_m + c]
            gat_ref[i:i + 1, c * dim:(c + 1) * dim] = table_ref[pl.ds(s, 1), :]

    # ONE batched MXU matmul per group; zero-padded child blocks in the
    # (pre-flattened) weight cancel unused child positions exactly.
    w_rule = w_ref[gid]                                       # (max_m*dim, dim)
    acc = jnp.dot(gat_ref[...].astype(w_rule.dtype), w_rule,
                  preferred_element_type=jnp.float32)         # (g_pad, dim)
    acc = acc + b_ref[pl.ds(gid, 1), :]

    # Contiguous lane-dense slab store of the whole group's encodings.
    table_ref[pl.ds(base, g_pad), :] = jnp.tanh(acc)


@functools.partial(jax.jit, static_argnames=("dim", "max_m", "g_pad", "s_pad"))
def encode_tree(gids, bases, child_slots, w_all, b_all, *,
                dim, max_m, g_pad, s_pad):
    """Single pallas_call that encodes a whole (pre-scheduled) tree."""
    n_groups = int(gids.shape[0])
    r_pad = int(w_all.shape[0])

    w_bytes = int(w_all.size) * w_all.dtype.itemsize
    b_bytes = int(b_all.size) * 4
    table_bytes = s_pad * dim * 4
    gat_bytes = g_pad * max_m * dim * 4
    vmem_need = 2 * table_bytes + w_bytes + b_bytes + gat_bytes
    vmem_limit = int(min(max(2 * vmem_need, 8 << 20), 64 << 20))

    cost = pl.CostEstimate(
        flops=2 * n_groups * g_pad * max_m * dim * dim,
        transcendentals=n_groups * g_pad * dim,
        bytes_accessed=int(w_bytes + b_bytes + 2 * table_bytes
                           + 4 * (gids.size + bases.size + child_slots.size)),
    )

    return pl.pallas_call(
        _tree_encode_kernel,
        grid_spec=pltpu.PrefetchScalarGridSpec(
            num_scalar_prefetch=3,
            grid=(n_groups,),
            in_specs=[
                pl.BlockSpec(memory_space=pl.ANY),   # weights stay in HBM
                pl.BlockSpec(memory_space=pl.ANY),   # biases stay in HBM
            ],
            out_specs=pl.BlockSpec((s_pad, dim), lambda g, *_: (0, 0)),
            scratch_shapes=[
                pltpu.VMEM((r_pad, max_m * dim, dim), w_all.dtype),
                pltpu.VMEM((r_pad, dim), jnp.float32),
                pltpu.VMEM((g_pad, max_m * dim), jnp.float32),
                pltpu.SemaphoreType.DMA((2,)),
            ]),
        out_shape=jax.ShapeDtypeStruct((s_pad, dim), jnp.float32),
        compiler_params=pltpu.CompilerParams(
            dimension_semantics=("arbitrary",),      # sequential level deps
            vmem_limit_bytes=vmem_limit),
        cost_estimate=cost,
    )(gids, bases, child_slots, w_all, b_all)


# ----------------------------------------------------------------------------
# Minimal deterministic regular tree grammar (stand-in for tree_grammar.*)
# ----------------------------------------------------------------------------
class TreeGrammar:
    def __init__(self, start, alphabet, rules):
        self._start = start          # starting nonterminal
        self._alphabet = alphabet    # set of terminal symbols
        self._rules = rules          # dict: nonterminal -> [(symbol, [children])]


def _root(adj):
    """Index of the node that is nobody's child."""
    has_parent = set()
    for children in adj:
        has_parent.update(children)
    for i in range(len(adj)):
        if i not in has_parent:
            return i
    raise ValueError("input is not a tree (no root found)")


# ----------------------------------------------------------------------------
# Encoder
# ----------------------------------------------------------------------------
class PallasEncoder:
    """JAX/Pallas port of the PyTorch Encoder (dim_hid=None)."""

    def __init__(self, grammar, dim, key, weight_dtype=jnp.bfloat16):
        # TODO(synk): dim_hid (two-layer per-child nets) path not implemented.
        # TODO(synk): starred ('*') / optional ('?') right-hand-side symbols
        #             are not ported; only exact right-hand-side matching.
        self._grammar = grammar
        self._dim = dim

        # Enumerate production rules with a global id used by the kernel.
        specs = []
        self._rules_by_sym = {}
        max_m = 1
        for left in grammar._rules:
            for r, (sym, rights) in enumerate(grammar._rules[left]):
                gid = len(specs)
                specs.append(dict(gid=gid, nont=left, sym=sym,
                                  rights=list(rights), rule_index=r,
                                  m=len(rights)))
                self._rules_by_sym.setdefault(sym, []).append(gid)
                max_m = max(max_m, len(rights))
        self._specs = specs
        self._max_m = max_m
        r_pad = _round_up(max(len(specs), 1), 8)

        # Per-rule weights flattened to (max_m*dim, dim) [in, out] layout with
        # zero-padded child blocks, stacked over rules.  Stored in bf16 for
        # MXU throughput / halved VMEM footprint; accumulation stays f32.
        # Init matches torch.nn.Linear: kaiming_uniform_(a=sqrt(5)) ->
        # U(-1/sqrt(dim), 1/sqrt(dim)); bias U(-1/sqrt(max_fan_in), ...).
        w_blocks, b_rows = [], []
        for spec in specs:
            m = spec["m"]
            blocks = []
            max_fan_in = 1
            w_bound = 1.0 / math.sqrt(dim)
            for _ in range(m):
                key, sub = jax.random.split(key)
                W = jax.random.uniform(sub, (dim, dim), jnp.float32,
                                       -w_bound, w_bound)   # torch (out, in)
                blocks.append(W.T)                           # stored (in, out)
                max_fan_in = max(max_fan_in, dim)
            if m < max_m:
                blocks.append(jnp.zeros(((max_m - m) * dim, dim), jnp.float32))
            w_blocks.append(jnp.concatenate(blocks, axis=0))
            key, sub = jax.random.split(key)
            b_bound = 1.0 / math.sqrt(max_fan_in)
            b_rows.append(jax.random.uniform(sub, (dim,), jnp.float32,
                                             -b_bound, b_bound))
        while len(w_blocks) < r_pad:
            w_blocks.append(jnp.zeros((max_m * dim, dim), jnp.float32))
            b_rows.append(jnp.zeros((dim,), jnp.float32))
        self._W_all = jnp.stack(w_blocks, axis=0).astype(weight_dtype)
        self._b_all = jnp.stack(b_rows, axis=0)     # (r_pad, dim) f32

    def forward(self, nodes, adj):
        return self.parse(nodes, adj)

    def parse(self, nodes, adj):
        r = _root(adj)
        n = len(nodes)
        node_gid = [None] * n
        node_level = [0] * n
        node_children = [None] * n
        nont, seq = self._match(nodes, adj, r, node_gid, node_level,
                                node_children)
        if nont != self._grammar._start:
            raise ValueError(
                "Parsing ended with symbol %s, which is not the starting "
                "symbol %s" % (str(nont), str(self._grammar._start)))

        # --- group nodes by (level, rule); chunk groups to <= g_pad rows ----
        by_level_rule = {}
        for i in range(n):
            by_level_rule.setdefault((node_level[i], node_gid[i]), []).append(i)
        max_members = max(len(v) for v in by_level_rule.values())
        g_pad = max(8, min(_next_pow2(max_members), _MAX_GROUP_ROWS))

        groups = []                       # (gid, members) in dependency order
        for lvl_gid in sorted(by_level_rule.keys()):
            members = by_level_rule[lvl_gid]
            for off in range(0, len(members), g_pad):
                groups.append((lvl_gid[1], members[off:off + g_pad]))
        n_groups = len(groups)
        n_groups_pad = _next_pow2(n_groups)              # compile-bucketed
        s_pad = (n_groups_pad + 1) * g_pad               # +1: reserved 0-block

        # Contiguous slot layout: group k owns rows [(k+1)*g_pad, (k+2)*g_pad)
        # so the kernel scatter is a single slab store.  Rows [0, g_pad) are
        # the reserved always-zero block (row 0 used for padded children).
        slot = [0] * n
        gid_tab, base_tab = [], []
        for k, (gid, members) in enumerate(groups):
            base = (k + 1) * g_pad
            gid_tab.append(gid)
            base_tab.append(base)
            for p, i in enumerate(members):
                slot[i] = base + p
        for k in range(n_groups, n_groups_pad):          # no-op padding groups
            gid_tab.append(0)
            base_tab.append((k + 1) * g_pad)

        child_tab = []
        for k in range(n_groups_pad):
            members = groups[k][1] if k < n_groups else []
            for p in range(g_pad):
                if p < len(members):
                    cs = [slot[j] for j in node_children[members[p]]]
                else:
                    cs = []
                child_tab.extend(cs + [0] * (self._max_m - len(cs)))

        gids = jnp.asarray(gid_tab, jnp.int32)
        bases = jnp.asarray(base_tab, jnp.int32)
        childs = jnp.asarray(child_tab, jnp.int32)

        table = encode_tree(gids, bases, childs, self._W_all, self._b_all,
                            dim=self._dim, max_m=self._max_m,
                            g_pad=g_pad, s_pad=s_pad)
        return seq, table[slot[r]]

    def _match(self, nodes, adj, i, node_gid, node_level, node_children):
        """Host-side grammar matching; records per-node rule / level / kids."""
        if nodes[i] not in self._grammar._alphabet:
            raise ValueError("%s is not part of the alphabet" % str(nodes[i]))
        actual_rights, seqs, levels = [], [], []
        for j in adj[i]:
            nont_j, seq_j = self._match(nodes, adj, j, node_gid, node_level,
                                        node_children)
            actual_rights.append(nont_j)
            seqs.append(seq_j)
            levels.append(node_level[j])
        for gid in self._rules_by_sym.get(nodes[i], []):
            spec = self._specs[gid]
            if spec["rights"] == actual_rights:    # exact matching only
                node_gid[i] = gid
                node_children[i] = list(adj[i])
                node_level[i] = 0 if not adj[i] else 1 + max(levels)
                seq = [spec["rule_index"]]
                for s in seqs:
                    seq += s
                return spec["nont"], seq
        raise ValueError(
            "No rule with %s(%s) on the right-hand side exists"
            % (str(nodes[i]), str(actual_rights)))


# ----------------------------------------------------------------------------
# main
# ----------------------------------------------------------------------------
if __name__ == "__main__":
    key = jax.random.PRNGKey(0)
    dim = 128   # lane-dense rows; K = max_m*dim = 256 matches v6e/v7x MXU

    # Grammar: S -> +(S, S) | x() | y()
    grammar = TreeGrammar(
        start="S",
        alphabet={"+", "x", "y"},
        rules={"S": [("+", ["S", "S"]), ("x", []), ("y", [])]},
    )
    encoder = PallasEncoder(grammar, dim, key)

    # Pure-JAX reference of the same recursion (same bf16 weights, f32 accum).
    def make_ref(nodes, adj):
        def ref_parse(i):
            sym = nodes[i]
            childs = [ref_parse(j) for j in adj[i]]
            actual = [c[0] for c in childs]
            for gid in encoder._rules_by_sym[sym]:
                spec = encoder._specs[gid]
                if spec["rights"] == actual:
                    acc = encoder._b_all[gid]
                    for c, (_, hc) in enumerate(childs):
                        w_c = encoder._W_all[
                            gid, c * dim:(c + 1) * dim, :].astype(jnp.float32)
                        hc_b = hc.astype(encoder._W_all.dtype).astype(
                            jnp.float32)
                        acc = acc + hc_b @ w_c
                    return spec["nont"], jnp.tanh(acc)
            raise ValueError("no matching rule")
        return ref_parse(_root(adj))[1]

    # Tree 1: +( +(x, y), x )
    nodes1 = ["+", "+", "x", "y", "x"]
    adj1 = [[1, 4], [2, 3], [], [], []]
    seq1, h1 = encoder.forward(nodes1, adj1)
    h1 = jax.block_until_ready(h1)
    h1_ref = make_ref(nodes1, adj1)
    assert h1.shape == (dim,)
    assert seq1 == [0, 0, 1, 2, 1], seq1
    err1 = float(jnp.max(jnp.abs(h1 - h1_ref)))
    assert err1 < 2e-3, err1

    # Tree 2: +( x, +(y, y) ) -- same bucket shapes, reuses the compiled kernel.
    nodes2 = ["+", "x", "+", "y", "y"]
    adj2 = [[1, 2], [], [3, 4], [], []]
    seq2, h2 = encoder.forward(nodes2, adj2)
    h2 = jax.block_until_ready(h2)
    h2_ref = make_ref(nodes2, adj2)
    assert seq2 == [0, 1, 0, 2, 2], seq2
    err2 = float(jnp.max(jnp.abs(h2 - h2_ref)))
    assert err2 < 2e-3, err2

    print("KERNEL_OK")
</pallas_src>

<mosaic_0001>
module attributes {stable_mosaic.version = 11 : i64} {
  func.func @_tree_encode_kernel(%arg0: i32, %arg1: memref<4xi32, #tpu.memory_space<smem>>, %arg2: memref<4xi32, #tpu.memory_space<smem>>, %arg3: memref<64xi32, #tpu.memory_space<smem>>, %arg4: memref<8x256x128xbf16, #tpu.memory_space<any>>, %arg5: memref<8x128xf32, #tpu.memory_space<any>>, %arg6: memref<40x128xf32, #tpu.memory_space<vmem>>, %arg7: memref<8x256x128xbf16, #tpu.memory_space<vmem>>, %arg8: memref<8x128xf32, #tpu.memory_space<vmem>>, %arg9: memref<8x256xf32, #tpu.memory_space<vmem>>, %arg10: memref<2x!tpu.dma_semaphore, #tpu.memory_space<semaphore_mem>>) attributes {dimension_semantics = [#tpu.dimension_semantics<arbitrary>], iteration_bounds = array<i64: 4>, scalar_prefetch = 3 : i64, scratch_operands = 4 : i64, tpu.core_type = #tpu.core_type<tc>, window_params = [{}, {}, {pipeline_mode = #tpu.pipeline_mode<synchronous>, transform_indices = @transform_2, window_bounds = array<i64: 40, 128>}]} {
    %c0_i32 = arith.constant 0 : i32
    %0 = arith.cmpi eq, %arg0, %c0_i32 : i32
    %1 = arith.extui %0 : i1 to i32
    %c0_i32_0 = arith.constant 0 : i32
    %2 = arith.cmpi ne, %1, %c0_i32_0 : i32
    scf.if %2 {
      %cst_102 = arith.constant 0.000000e+00 : f32
      %165 = vector.broadcast %cst_102 : f32 to vector<40x128xf32>
      %c0_103 = arith.constant 0 : index
      %c0_104 = arith.constant 0 : index
      %166 = vector.load %arg6[%c0_103, %c0_104] : memref<40x128xf32, #tpu.memory_space<vmem>>, vector<40x128xf32>
      tpu.vector_store %arg6[%c0_103, %c0_104], %165 {strides = array<i32>} : memref<40x128xf32, #tpu.memory_space<vmem>>, vector<40x128xf32>,
      %c0_i32_105 = arith.constant 0 : i32
      %167 = tpu.memref_slice %arg10[%c0_i32_105] : memref<2x!tpu.dma_semaphore, #tpu.memory_space<semaphore_mem>> -> memref<1x!tpu.dma_semaphore, #tpu.memory_space<semaphore_mem>>
      %168 = tpu.memref_squeeze %167 : memref<1x!tpu.dma_semaphore, #tpu.memory_space<semaphore_mem>> -> memref<!tpu.dma_semaphore, #tpu.memory_space<semaphore_mem>>
      tpu.enqueue_dma source(%arg4 : memref<8x256x128xbf16, #tpu.memory_space<any>>) target(%arg7 : memref<8x256x128xbf16, #tpu.memory_space<vmem>>) target_semaphore(%168 : memref<!tpu.dma_semaphore, #tpu.memory_space<semaphore_mem>>)
      %c1_i32_106 = arith.constant 1 : i32
      %169 = tpu.memref_slice %arg10[%c1_i32_106] : memref<2x!tpu.dma_semaphore, #tpu.memory_space<semaphore_mem>> -> memref<1x!tpu.dma_semaphore, #tpu.memory_space<semaphore_mem>>
      %170 = tpu.memref_squeeze %169 : memref<1x!tpu.dma_semaphore, #tpu.memory_space<semaphore_mem>> -> memref<!tpu.dma_semaphore, #tpu.memory_space<semaphore_mem>>
      tpu.enqueue_dma source(%arg5 : memref<8x128xf32, #tpu.memory_space<any>>) target(%arg8 : memref<8x128xf32, #tpu.memory_space<vmem>>) target_semaphore(%170 : memref<!tpu.dma_semaphore, #tpu.memory_space<semaphore_mem>>)
      %c0_i32_107 = arith.constant 0 : i32
      %171 = tpu.memref_slice %arg10[%c0_i32_107] : memref<2x!tpu.dma_semaphore, #tpu.memory_space<semaphore_mem>> -> memref<1x!tpu.dma_semaphore, #tpu.memory_space<semaphore_mem>>
      %172 = tpu.memref_squeeze %171 : memref<1x!tpu.dma_semaphore, #tpu.memory_space<semaphore_mem>> -> memref<!tpu.dma_semaphore, #tpu.memory_space<semaphore_mem>>
      tpu.wait_dma2 semaphore(%172 : memref<!tpu.dma_semaphore, #tpu.memory_space<semaphore_mem>>) src(%arg4 : memref<8x256x128xbf16, #tpu.memory_space<any>>) dst(%arg7 : memref<8x256x128xbf16, #tpu.memory_space<vmem>>)
      %c1_i32_108 = arith.constant 1 : i32
      %173 = tpu.memref_slice %arg10[%c1_i32_108] : memref<2x!tpu.dma_semaphore, #tpu.memory_space<semaphore_mem>> -> memref<1x!tpu.dma_semaphore, #tpu.memory_space<semaphore_mem>>
      %174 = tpu.memref_squeeze %173 : memref<1x!tpu.dma_semaphore, #tpu.memory_space<semaphore_mem>> -> memref<!tpu.dma_semaphore, #tpu.memory_space<semaphore_mem>>
      tpu.wait_dma2 semaphore(%174 : memref<!tpu.dma_semaphore, #tpu.memory_space<semaphore_mem>>) src(%arg5 : memref<8x128xf32, #tpu.memory_space<any>>) dst(%arg8 : memref<8x128xf32, #tpu.memory_space<vmem>>)
    } else {
    }
    %3 = arith.index_cast %arg0 : i32 to index
    %4 = memref.load %arg1[%3] : memref<4xi32, #tpu.memory_space<smem>>
    %5 = arith.index_cast %arg0 : i32 to index
    %6 = memref.load %arg2[%5] : memref<4xi32, #tpu.memory_space<smem>>
    %7 = tpu.assume_multiple %6, 8 : i32
    %c8_i32 = arith.constant 8 : i32
    %8 = arith.muli %arg0, %c8_i32 : i32
    %c0_i32_1 = arith.constant 0 : i32
    %9 = arith.addi %8, %c0_i32_1 : i32
    %c2_i32 = arith.constant 2 : i32
    %10 = arith.muli %9, %c2_i32 : i32
    %c0_i32_2 = arith.constant 0 : i32
    %11 = arith.addi %10, %c0_i32_2 : i32
    %12 = arith.index_cast %11 : i32 to index
    %13 = memref.load %arg3[%12] : memref<64xi32, #tpu.memory_space<smem>>
    %14 = arith.index_cast %13 : i32 to index
    %c0 = arith.constant 0 : index
    %15 = vector.load %arg6[%14, %c0] : memref<40x128xf32, #tpu.memory_space<vmem>>, vector<1x128xf32>
    %c0_3 = arith.constant 0 : index
    %c0_4 = arith.constant 0 : index
    %16 = vector.load %arg9[%c0_3, %c0_4] : memref<8x256xf32, #tpu.memory_space<vmem>>, vector<1x128xf32>
    tpu.vector_store %arg9[%c0_3, %c0_4], %15 {strides = array<i32>} : memref<8x256xf32, #tpu.memory_space<vmem>>, vector<1x128xf32>,
    %c8_i32_5 = arith.constant 8 : i32
    %17 = arith.muli %arg0, %c8_i32_5 : i32
    %c0_i32_6 = arith.constant 0 : i32
    %18 = arith.addi %17, %c0_i32_6 : i32
    %c2_i32_7 = arith.constant 2 : i32
    %19 = arith.muli %18, %c2_i32_7 : i32
    %c1_i32 = arith.constant 1 : i32
    %20 = arith.addi %19, %c1_i32 : i32
    %21 = arith.index_cast %20 : i32 to index
    %22 = memref.load %arg3[%21] : memref<64xi32, #tpu.memory_space<smem>>
    %23 = arith.index_cast %22 : i32 to index
    %c0_8 = arith.constant 0 : index
    %24 = vector.load %arg6[%23, %c0_8] : memref<40x128xf32, #tpu.memory_space<vmem>>, vector<1x128xf32>
    %c0_9 = arith.constant 0 : index
    %c128 = arith.constant 128 : index
    %25 = vector.load %arg9[%c0_9, %c128] : memref<8x256xf32, #tpu.memory_space<vmem>>, vector<1x128xf32>
    tpu.vector_store %arg9[%c0_9, %c128], %24 {strides = array<i32>} : memref<8x256xf32, #tpu.memory_space<vmem>>, vector<1x128xf32>,
    %c8_i32_10 = arith.constant 8 : i32
    %26 = arith.muli %arg0, %c8_i32_10 : i32
    %c1_i32_11 = arith.constant 1 : i32
    %27 = arith.addi %26, %c1_i32_11 : i32
    %c2_i32_12 = arith.constant 2 : i32
    %28 = arith.muli %27, %c2_i32_12 : i32
    %c0_i32_13 = arith.constant 0 : i32
    %29 = arith.addi %28, %c0_i32_13 : i32
    %30 = arith.index_cast %29 : i32 to index
    %31 = memref.load %arg3[%30] : memref<64xi32, #tpu.memory_space<smem>>
    %32 = arith.index_cast %31 : i32 to index
    %c0_14 = arith.constant 0 : index
    %33 = vector.load %arg6[%32, %c0_14] : memref<40x128xf32, #tpu.memory_space<vmem>>, vector<1x128xf32>
    %c1 = arith.constant 1 : index
    %c0_15 = arith.constant 0 : index
    %34 = vector.load %arg9[%c1, %c0_15] : memref<8x256xf32, #tpu.memory_space<vmem>>, vector<1x128xf32>
    tpu.vector_store %arg9[%c1, %c0_15], %33 {strides = array<i32>} : memref<8x256xf32, #tpu.memory_space<vmem>>, vector<1x128xf32>,
    %c8_i32_16 = arith.constant 8 : i32
    %35 = arith.muli %arg0, %c8_i32_16 : i32
    %c1_i32_17 = arith.constant 1 : i32
    %36 = arith.addi %35, %c1_i32_17 : i32
    %c2_i32_18 = arith.constant 2 : i32
    %37 = arith.muli %36, %c2_i32_18 : i32
    %c1_i32_19 = arith.constant 1 : i32
    %38 = arith.addi %37, %c1_i32_19 : i32
    %39 = arith.index_cast %38 : i32 to index
    %40 = memref.load %arg3[%39] : memref<64xi32, #tpu.memory_space<smem>>
    %41 = arith.index_cast %40 : i32 to index
    %c0_20 = arith.constant 0 : index
    %42 = vector.load %arg6[%41, %c0_20] : memref<40x128xf32, #tpu.memory_space<vmem>>, vector<1x128xf32>
    %c1_21 = arith.constant 1 : index
    %c128_22 = arith.constant 128 : index
    %43 = vector.load %arg9[%c1_21, %c128_22] : memref<8x256xf32, #tpu.memory_space<vmem>>, vector<1x128xf32>
    tpu.vector_store %arg9[%c1_21, %c128_22], %42 {strides = array<i32>} : memref<8x256xf32, #tpu.memory_space<vmem>>, vector<1x128xf32>,
    %c8_i32_23 = arith.constant 8 : i32
    %44 = arith.muli %arg0, %c8_i32_23 : i32
    %c2_i32_24 = arith.constant 2 : i32
    %45 = arith.addi %44, %c2_i32_24 : i32
    %c2_i32_25 = arith.constant 2 : i32
    %46 = arith.muli %45, %c2_i32_25 : i32
    %c0_i32_26 = arith.constant 0 : i32
    %47 = arith.addi %46, %c0_i32_26 : i32
    %48 = arith.index_cast %47 : i32 to index
    %49 = memref.load %arg3[%48] : memref<64xi32, #tpu.memory_space<smem>>
    %50 = arith.index_cast %49 : i32 to index
    %c0_27 = arith.constant 0 : index
    %51 = vector.load %arg6[%50, %c0_27] : memref<40x128xf32, #tpu.memory_space<vmem>>, vector<1x128xf32>
    %c2 = arith.constant 2 : index
    %c0_28 = arith.constant 0 : index
    %52 = vector.load %arg9[%c2, %c0_28] : memref<8x256xf32, #tpu.memory_space<vmem>>, vector<1x128xf32>
    tpu.vector_store %arg9[%c2, %c0_28], %51 {strides = array<i32>} : memref<8x256xf32, #tpu.memory_space<vmem>>, vector<1x128xf32>,
    %c8_i32_29 = arith.constant 8 : i32
    %53 = arith.muli %arg0, %c8_i32_29 : i32
    %c2_i32_30 = arith.constant 2 : i32
    %54 = arith.addi %53, %c2_i32_30 : i32
    %c2_i32_31 = arith.constant 2 : i32
    %55 = arith.muli %54, %c2_i32_31 : i32
    %c1_i32_32 = arith.constant 1 : i32
    %56 = arith.addi %55, %c1_i32_32 : i32
    %57 = arith.index_cast %56 : i32 to index
    %58 = memref.load %arg3[%57] : memref<64xi32, #tpu.memory_space<smem>>
    %59 = arith.index_cast %58 : i32 to index
    %c0_33 = arith.constant 0 : index
    %60 = vector.load %arg6[%59, %c0_33] : memref<40x128xf32, #tpu.memory_space<vmem>>, vector<1x128xf32>
    %c2_34 = arith.constant 2 : index
    %c128_35 = arith.constant 128 : index
    %61 = vector.load %arg9[%c2_34, %c128_35] : memref<8x256xf32, #tpu.memory_space<vmem>>, vector<1x128xf32>
    tpu.vector_store %arg9[%c2_34, %c128_35], %60 {strides = array<i32>} : memref<8x256xf32, #tpu.memory_space<vmem>>, vector<1x128xf32>,
    %c8_i32_36 = arith.constant 8 : i32
    %62 = arith.muli %arg0, %c8_i32_36 : i32
    %c3_i32 = arith.constant 3 : i32
    %63 = arith.addi %62, %c3_i32 : i32
    %c2_i32_37 = arith.constant 2 : i32
    %64 = arith.muli %63, %c2_i32_37 : i32
    %c0_i32_38 = arith.constant 0 : i32
    %65 = arith.addi %64, %c0_i32_38 : i32
    %66 = arith.index_cast %65 : i32 to index
    %67 = memref.load %arg3[%66] : memref<64xi32, #tpu.memory_space<smem>>
    %68 = arith.index_cast %67 : i32 to index
    %c0_39 = arith.constant 0 : index
    %69 = vector.load %arg6[%68, %c0_39] : memref<40x128xf32, #tpu.memory_space<vmem>>, vector<1x128xf32>
    %c3 = arith.constant 3 : index
    %c0_40 = arith.constant 0 : index
    %70 = vector.load %arg9[%c3, %c0_40] : memref<8x256xf32, #tpu.memory_space<vmem>>, vector<1x128xf32>
    tpu.vector_store %arg9[%c3, %c0_40], %69 {strides = array<i32>} : memref<8x256xf32, #tpu.memory_space<vmem>>, vector<1x128xf32>,
    %c8_i32_41 = arith.constant 8 : i32
    %71 = arith.muli %arg0, %c8_i32_41 : i32
    %c3_i32_42 = arith.constant 3 : i32
    %72 = arith.addi %71, %c3_i32_42 : i32
    %c2_i32_43 = arith.constant 2 : i32
    %73 = arith.muli %72, %c2_i32_43 : i32
    %c1_i32_44 = arith.constant 1 : i32
    %74 = arith.addi %73, %c1_i32_44 : i32
    %75 = arith.index_cast %74 : i32 to index
    %76 = memref.load %arg3[%75] : memref<64xi32, #tpu.memory_space<smem>>
    %77 = arith.index_cast %76 : i32 to index
    %c0_45 = arith.constant 0 : index
    %78 = vector.load %arg6[%77, %c0_45] : memref<40x128xf32, #tpu.memory_space<vmem>>, vector<1x128xf32>
    %c3_46 = arith.constant 3 : index
    %c128_47 = arith.constant 128 : index
    %79 = vector.load %arg9[%c3_46, %c128_47] : memref<8x256xf32, #tpu.memory_space<vmem>>, vector<1x128xf32>
    tpu.vector_store %arg9[%c3_46, %c128_47], %78 {strides = array<i32>} : memref<8x256xf32, #tpu.memory_space<vmem>>, vector<1x128xf32>,
    %c8_i32_48 = arith.constant 8 : i32
    %80 = arith.muli %arg0, %c8_i32_48 : i32
    %c4_i32 = arith.constant 4 : i32
    %81 = arith.addi %80, %c4_i32 : i32
    %c2_i32_49 = arith.constant 2 : i32
    %82 = arith.muli %81, %c2_i32_49 : i32
    %c0_i32_50 = arith.constant 0 : i32
    %83 = arith.addi %82, %c0_i32_50 : i32
    %84 = arith.index_cast %83 : i32 to index
    %85 = memref.load %arg3[%84] : memref<64xi32, #tpu.memory_space<smem>>
    %86 = arith.index_cast %85 : i32 to index
    %c0_51 = arith.constant 0 : index
    %87 = vector.load %arg6[%86, %c0_51] : memref<40x128xf32, #tpu.memory_space<vmem>>, vector<1x128xf32>
    %c4 = arith.constant 4 : index
    %c0_52 = arith.constant 0 : index
    %88 = vector.load %arg9[%c4, %c0_52] : memref<8x256xf32, #tpu.memory_space<vmem>>, vector<1x128xf32>
    tpu.vector_store %arg9[%c4, %c0_52], %87 {strides = array<i32>} : memref<8x256xf32, #tpu.memory_space<vmem>>, vector<1x128xf32>,
    %c8_i32_53 = arith.constant 8 : i32
    %89 = arith.muli %arg0, %c8_i32_53 : i32
    %c4_i32_54 = arith.constant 4 : i32
    %90 = arith.addi %89, %c4_i32_54 : i32
    %c2_i32_55 = arith.constant 2 : i32
    %91 = arith.muli %90, %c2_i32_55 : i32
    %c1_i32_56 = arith.constant 1 : i32
    %92 = arith.addi %91, %c1_i32_56 : i32
    %93 = arith.index_cast %92 : i32 to index
    %94 = memref.load %arg3[%93] : memref<64xi32, #tpu.memory_space<smem>>
    %95 = arith.index_cast %94 : i32 to index
    %c0_57 = arith.constant 0 : index
    %96 = vector.load %arg6[%95, %c0_57] : memref<40x128xf32, #tpu.memory_space<vmem>>, vector<1x128xf32>
    %c4_58 = arith.constant 4 : index
    %c128_59 = arith.constant 128 : index
    %97 = vector.load %arg9[%c4_58, %c128_59] : memref<8x256xf32, #tpu.memory_space<vmem>>, vector<1x128xf32>
    tpu.vector_store %arg9[%c4_58, %c128_59], %96 {strides = array<i32>} : memref<8x256xf32, #tpu.memory_space<vmem>>, vector<1x128xf32>,
    %c8_i32_60 = arith.constant 8 : i32
    %98 = arith.muli %arg0, %c8_i32_60 : i32
    %c5_i32 = arith.constant 5 : i32
    %99 = arith.addi %98, %c5_i32 : i32
    %c2_i32_61 = arith.constant 2 : i32
    %100 = arith.muli %99, %c2_i32_61 : i32
    %c0_i32_62 = arith.constant 0 : i32
    %101 = arith.addi %100, %c0_i32_62 : i32
    %102 = arith.index_cast %101 : i32 to index
    %103 = memref.load %arg3[%102] : memref<64xi32, #tpu.memory_space<smem>>
    %104 = arith.index_cast %103 : i32 to index
    %c0_63 = arith.constant 0 : index
    %105 = vector.load %arg6[%104, %c0_63] : memref<40x128xf32, #tpu.memory_space<vmem>>, vector<1x128xf32>
    %c5 = arith.constant 5 : index
    %c0_64 = arith.constant 0 : index
    %106 = vector.load %arg9[%c5, %c0_64] : memref<8x256xf32, #tpu.memory_space<vmem>>, vector<1x128xf32>
    tpu.vector_store %arg9[%c5, %c0_64], %105 {strides = array<i32>} : memref<8x256xf32, #tpu.memory_space<vmem>>, vector<1x128xf32>,
    %c8_i32_65 = arith.constant 8 : i32
    %107 = arith.muli %arg0, %c8_i32_65 : i32
    %c5_i32_66 = arith.constant 5 : i32
    %108 = arith.addi %107, %c5_i32_66 : i32
    %c2_i32_67 = arith.constant 2 : i32
    %109 = arith.muli %108, %c2_i32_67 : i32
    %c1_i32_68 = arith.constant 1 : i32
    %110 = arith.addi %109, %c1_i32_68 : i32
    %111 = arith.index_cast %110 : i32 to index
    %112 = memref.load %arg3[%111] : memref<64xi32, #tpu.memory_space<smem>>
    %113 = arith.index_cast %112 : i32 to index
    %c0_69 = arith.constant 0 : index
    %114 = vector.load %arg6[%113, %c0_69] : memref<40x128xf32, #tpu.memory_space<vmem>>, vector<1x128xf32>
    %c5_70 = arith.constant 5 : index
    %c128_71 = arith.constant 128 : index
    %115 = vector.load %arg9[%c5_70, %c128_71] : memref<8x256xf32, #tpu.memory_space<vmem>>, vector<1x128xf32>
    tpu.vector_store %arg9[%c5_70, %c128_71], %114 {strides = array<i32>} : memref<8x256xf32, #tpu.memory_space<vmem>>, vector<1x128xf32>,
    %c8_i32_72 = arith.constant 8 : i32
    %116 = arith.muli %arg0, %c8_i32_72 : i32
    %c6_i32 = arith.constant 6 : i32
    %117 = arith.addi %116, %c6_i32 : i32
    %c2_i32_73 = arith.constant 2 : i32
    %118 = arith.muli %117, %c2_i32_73 : i32
    %c0_i32_74 = arith.constant 0 : i32
    %119 = arith.addi %118, %c0_i32_74 : i32
    %120 = arith.index_cast %119 : i32 to index
    %121 = memref.load %arg3[%120] : memref<64xi32, #tpu.memory_space<smem>>
    %122 = arith.index_cast %121 : i32 to index
    %c0_75 = arith.constant 0 : index
    %123 = vector.load %arg6[%122, %c0_75] : memref<40x128xf32, #tpu.memory_space<vmem>>, vector<1x128xf32>
    %c6 = arith.constant 6 : index
    %c0_76 = arith.constant 0 : index
    %124 = vector.load %arg9[%c6, %c0_76] : memref<8x256xf32, #tpu.memory_space<vmem>>, vector<1x128xf32>
    tpu.vector_store %arg9[%c6, %c0_76], %123 {strides = array<i32>} : memref<8x256xf32, #tpu.memory_space<vmem>>, vector<1x128xf32>,
    %c8_i32_77 = arith.constant 8 : i32
    %125 = arith.muli %arg0, %c8_i32_77 : i32
    %c6_i32_78 = arith.constant 6 : i32
    %126 = arith.addi %125, %c6_i32_78 : i32
    %c2_i32_79 = arith.constant 2 : i32
    %127 = arith.muli %126, %c2_i32_79 : i32
    %c1_i32_80 = arith.constant 1 : i32
    %128 = arith.addi %127, %c1_i32_80 : i32
    %129 = arith.index_cast %128 : i32 to index
    %130 = memref.load %arg3[%129] : memref<64xi32, #tpu.memory_space<smem>>
    %131 = arith.index_cast %130 : i32 to index
    %c0_81 = arith.constant 0 : index
    %132 = vector.load %arg6[%131, %c0_81] : memref<40x128xf32, #tpu.memory_space<vmem>>, vector<1x128xf32>
    %c6_82 = arith.constant 6 : index
    %c128_83 = arith.constant 128 : index
    %133 = vector.load %arg9[%c6_82, %c128_83] : memref<8x256xf32, #tpu.memory_space<vmem>>, vector<1x128xf32>
    tpu.vector_store %arg9[%c6_82, %c128_83], %132 {strides = array<i32>} : memref<8x256xf32, #tpu.memory_space<vmem>>, vector<1x128xf32>,
    %c8_i32_84 = arith.constant 8 : i32
    %134 = arith.muli %arg0, %c8_i32_84 : i32
    %c7_i32 = arith.constant 7 : i32
    %135 = arith.addi %134, %c7_i32 : i32
    %c2_i32_85 = arith.constant 2 : i32
    %136 = arith.muli %135, %c2_i32_85 : i32
    %c0_i32_86 = arith.constant 0 : i32
    %137 = arith.addi %136, %c0_i32_86 : i32
    %138 = arith.index_cast %137 : i32 to index
    %139 = memref.load %arg3[%138] : memref<64xi32, #tpu.memory_space<smem>>
    %140 = arith.index_cast %139 : i32 to index
    %c0_87 = arith.constant 0 : index
    %141 = vector.load %arg6[%140, %c0_87] : memref<40x128xf32, #tpu.memory_space<vmem>>, vector<1x128xf32>
    %c7 = arith.constant 7 : index
    %c0_88 = arith.constant 0 : index
    %142 = vector.load %arg9[%c7, %c0_88] : memref<8x256xf32, #tpu.memory_space<vmem>>, vector<1x128xf32>
    tpu.vector_store %arg9[%c7, %c0_88], %141 {strides = array<i32>} : memref<8x256xf32, #tpu.memory_space<vmem>>, vector<1x128xf32>,
    %c8_i32_89 = arith.constant 8 : i32
    %143 = arith.muli %arg0, %c8_i32_89 : i32
    %c7_i32_90 = arith.constant 7 : i32
    %144 = arith.addi %143, %c7_i32_90 : i32
    %c2_i32_91 = arith.constant 2 : i32
    %145 = arith.muli %144, %c2_i32_91 : i32
    %c1_i32_92 = arith.constant 1 : i32
    %146 = arith.addi %145, %c1_i32_92 : i32
    %147 = arith.index_cast %146 : i32 to index
    %148 = memref.load %arg3[%147] : memref<64xi32, #tpu.memory_space<smem>>
    %149 = arith.index_cast %148 : i32 to index
    %c0_93 = arith.constant 0 : index
    %150 = vector.load %arg6[%149, %c0_93] : memref<40x128xf32, #tpu.memory_space<vmem>>, vector<1x128xf32>
    %c7_94 = arith.constant 7 : index
    %c128_95 = arith.constant 128 : index
    %151 = vector.load %arg9[%c7_94, %c128_95] : memref<8x256xf32, #tpu.memory_space<vmem>>, vector<1x128xf32>
    tpu.vector_store %arg9[%c7_94, %c128_95], %150 {strides = array<i32>} : memref<8x256xf32, #tpu.memory_space<vmem>>, vector<1x128xf32>,
    %152 = arith.index_cast %4 : i32 to index
    %c0_96 = arith.constant 0 : index
    %c0_97 = arith.constant 0 : index
    %153 = vector.load %arg7[%152, %c0_96, %c0_97] : memref<8x256x128xbf16, #tpu.memory_space<vmem>>, vector<1x256x128xbf16>
    %154 = vector.shape_cast %153 : vector<1x256x128xbf16> to vector<256x128xbf16>
    %c0_98 = arith.constant 0 : index
    %c0_99 = arith.constant 0 : index
    %155 = vector.load %arg9[%c0_98, %c0_99] : memref<8x256xf32, #tpu.memory_space<vmem>>, vector<8x256xf32>
    %156 = arith.truncf %155 : vector<8x256xf32> to vector<8x256xbf16>
    %cst = arith.constant dense<0.000000e+00> : vector<8x128xf32>
    %157 = tpu.matmul %156, %154, %cst {dimension_numbers = #tpu.dot_dimension_numbers<[1], [0], [0], [1], [0, 0, 1, 1], [], []>} : vector<8x256xbf16>, vector<256x128xbf16>, vector<8x128xf32> -> vector<8x128xf32>
    %158 = arith.index_cast %4 : i32 to index
    %c0_100 = arith.constant 0 : index
    %159 = vector.load %arg8[%158, %c0_100] : memref<8x128xf32, #tpu.memory_space<vmem>>, vector<1x128xf32>
    %160 = vector.broadcast %159 : vector<1x128xf32> to vector<8x128xf32>
    %161 = arith.addf %157, %160 : vector<8x128xf32>
    %162 = math.tanh %161 : vector<8x128xf32>
    %163 = arith.index_cast %7 : i32 to index
    %c0_101 = arith.constant 0 : index
    %164 = vector.load %arg6[%163, %c0_101] : memref<40x128xf32, #tpu.memory_space<vmem>>, vector<8x128xf32>
    tpu.vector_store %arg6[%163, %c0_101], %162 {strides = array<i32>} : memref<40x128xf32, #tpu.memory_space<vmem>>, vector<8x128xf32>,
    return
  }
  func.func @transform_2(%arg0: i32, %arg1: memref<4xi32, #tpu.memory_space<smem>>, %arg2: memref<4xi32, #tpu.memory_space<smem>>, %arg3: memref<64xi32, #tpu.memory_space<smem>>) -> (i32, i32) {
    %c0_i32 = arith.constant 0 : i32
    %c0_i32_0 = arith.constant 0 : i32
    %c0_i32_1 = arith.constant 0 : i32
    return %c0_i32, %c0_i32_0 : i32, i32
  }
}

</mosaic_0001>

<llo_original>
// kernel: encode_tree.1
$region0: #{encode_tree.1}
  #allocation0 [shape = 'u32[]', space=smem, size = 0x4, offset = 0x4, fixed_abs, tag = 'smem constant byte address 0x4 - core index']
  #allocation1 [shape = 'u32[144,128]{1,0:T(1,128)}', space=vmem, size = 0x12000, scoped, tag = 'internal scratch']
  #allocation2 [shape = 'bf16[8,256,128]{2,1,0:T(16,128)(2,1)}', space=vmem, size = 0x80000, scoped, tag = 'scratch operand']
  #allocation3 [shape = 'f32[8,128]{1,0:T(8,128)}', space=vmem, size = 0x1000, scoped, tag = 'scratch operand']
  #allocation4 [shape = 'f32[8,256]{1,0:T(8,128)}', space=vmem, size = 0x2000, scoped, tag = 'scratch operand']
  #allocation5 [shape = 's32[2]{0}', space=sflag, size = 0x8, scoped, tag = 'scratch operand']
  #allocation6 [shape = 's32[1]{0}', space=sflag, size = 0x4, scoped, tag = 'scoped memory for encode_tree.1']
  #allocation7 [shape = 'u8[512]{0}', space=smem, size = 0x200, scoped, tag = 'prefetched SMEM operand 0']
  #allocation8 [shape = 'u8[512]{0}', space=smem, size = 0x200, scoped, tag = 'prefetched SMEM operand 1']
  #allocation9 [shape = 'u8[512]{0}', space=smem, size = 0x200, scoped, tag = 'prefetched SMEM operand 2']
  #allocation12 [shape = 's32[]', space=sflag, size = 0x4, offset = 0, fixed_abs, tag = 'sflag constant byte address 0x0 - dummy sync flag']
  #allocation13 [shape = 's32[]', space=sflag, size = 0x4, offset = 0, fixed_abs, tag = 'sflag constant byte address 0x0 - dummy sync flag']
  #allocation14 [shape = 'u32[]', space=smem, size = 0x4, offset = 0x44, fixed_abs, tag = 'smem constant byte address 0x44 - assertion arg 0']
  #allocation15 [shape = 'u32[]', space=smem, size = 0x4, offset = 0x48, fixed_abs, tag = 'smem constant byte address 0x48 - assertion arg 1']
  #allocation16 [shape = 's32[]', space=sflag, size = 0x4, offset = 0, fixed_abs, tag = 'sflag constant byte address 0x0 - dummy sync flag']
  %s0 = inlined_call_operand.hbm [shape: s32[4], index: 0, kind: input, shape index: {}]
  %s1 = inlined_call_operand.vmem [shape: s32[4], index: 1, kind: input, shape index: {}]
  %s2 = inlined_call_operand.vmem [shape: s32[64], index: 2, kind: input, shape index: {}]
  %s3 = inlined_call_operand.hbm [shape: bf16[8,256,128], index: 3, kind: input, shape index: {}]
  %s4 = inlined_call_operand.vmem [shape: f32[8,128], index: 4, kind: input, shape index: {}]
  %s5 = inlined_call_operand.hbm [shape: f32[40,128], index: 5, kind: output, shape index: {}]
  %s6 = sld [smem:[#allocation0]]
  $region67: #{encode_tree.1} parent=0
    _
  %s8 = ssub.s32 1, %s6
  %s9 = scalar_select 0, %s8, %s6
  %11 = dma.hbm_to_smem %s0, 16, [#allocation7], [#allocation6]
  %s12 = sshll.u32 %s1, 4
  %s13 = int_to_ptr.vmem [resolvable:$true] %s12
  %15 = dma.vmem_to_smem %s13, 16, [#allocation8], [#allocation6]
  %s16 = sshll.u32 %s2, 4
  %s17 = int_to_ptr.vmem [resolvable:$true] %s16
  %19 = dma.vmem_to_smem %s17, 16, [#allocation9], [#allocation6]
  %20 = dma.done [#allocation6], 48
  %21 = sfence
  $region1: #{encode_tree.1} parent=0
    #allocation10 [shape = 'u8[20480]{0}', space=vmem, size = 0x5000, scoped, tag = 'output window, operand 0, single buffered']
    #allocation11 [shape = 's32[2]{0}', space=sflag, size = 0x8, scoped, tag = 'scoped memory for encode_tree.1']
    %22 = vsyncpa [#allocation11], 0
    loop: start=0, step=1, limit=5
    $region2: #{encode_tree.1} parent=1 // loop_pre_header
      _
    $region3: #{encode_tree.1} parent=1 // loop_header
      %s24 = sphi 0, %s28
      %p25 = scmp.ge.s32.totalorder %s24, 5
      %s31 = sphi 0, %s31
      %s33 = sphi 0, %s31
      %s41 = sphi 0, %s33
    $region4: #{encode_tree.1} parent=1 // loop_header_branch
      %27 = sbr.rel (%p25) target = $region8
    $region5: #{encode_tree.1} parent=1 // loop_body
      %s29 = ssub.s32 %s24, 1
      %s30 = sadd.s32 %s24, 1
      %s32 = sadd.s32 %s31, 1
      %p34 = scmp.eq.s32.totalorder %s24, 3
      %p35 = scmp.ne.s32.totalorder %s31, %s33
      %p36 = scmp.eq.s32.totalorder %s24, 0
      %p37 = por %p35, %p36
      %p38 = scmp.ne.s32.totalorder %s31, %s33
      %p39 = scmp.eq.s32.totalorder %s29, 3
      %p40 = por %p38, %p39
      %p42 = scmp.ne.s32.totalorder %s33, %s41
      %p43 = scmp.eq.s32.totalorder %s29, 0
      %p44 = por %p42, %p43
      %p45 = scmp.lt.s32.totalorder %s24, 4
      // Predicated region
      $region9: #{encode_tree.1} parent=5 // pred_check
        %p46 = pneg %p45
      $region10: #{encode_tree.1} parent=5 // pred_check_branch
        %48 = sbr.rel (%p46) target = $region12
      $region11: #{encode_tree.1} parent=5 // pred_region
        %p49 = pneg %p37
        %p50 = pneg %p34
        %p52 = scmp.eq.s32.totalorder %s24, 0
        // Predicated region
        $region13: #{encode_tree.1} parent=11 // pred_check
          %p53 = pneg %p52
        $region14: #{encode_tree.1} parent=11 // pred_check_branch
          %55 = sbr.rel (%p53) target = $region16
        $region15: #{encode_tree.1} parent=11 // pred_region
          %56 = vst [vmem:[#allocation10] sm:$0xff] 0.0
          %57 = vst [vmem:[#allocation10 + $0x8] sm:$0xff] 0.0
          %58 = vst [vmem:[#allocation10 + $0x10] sm:$0xff] 0.0
          %59 = vst [vmem:[#allocation10 + $0x18] sm:$0xff] 0.0
          %60 = vst [vmem:[#allocation10 + $0x20] sm:$0xff] 0.0
          // Predicated region
          $region17: #{encode_tree.1} parent=15 // pred_check
            _
          $region18: #{encode_tree.1} parent=15 // pred_check_branch
            %62 = sbr.rel target = $region20
          $region19: #{encode_tree.1} parent=15 // pred_region
            %63 = sst [smem:[#allocation14]] [#allocation13]
            %64 = sst [smem:[#allocation15]] [#allocation12]
          $region20: #{encode_tree.1} parent=15 // pred_fallthru
            _
          %66 = shalt.err (0)
          %s68 = sshll.u32 [#allocation2], 4
          %s69 = int_to_ptr.vmem [resolvable:$true] %s68
          %71 = dma.hbm_to_vmem [thread:$0]  %s3, 16384, %s69, [#allocation5]
          %s72 = scalar_lea.sflag [#allocation5], 1
          %p74 = scmp.lt.u32.totalorder 8, 8
          %p75 = pneg %p74
          // Predicated region
          $region21: #{encode_tree.1} parent=15 // pred_check
            _
          $region22: #{encode_tree.1} parent=15 // pred_check_branch
            %77 = sbr.rel (%p74) target = $region24
          $region23: #{encode_tree.1} parent=15 // pred_region
            %s92 = sand.u32 8, 7
            %p93 = scmp.eq.s32.totalorder %s92, 0
            // Predicated region
            $region36: #{encode_tree.1} parent=23 // pred_check
              %p94 = pneg %p93
            $region37: #{encode_tree.1} parent=23 // pred_check_branch
              %96 = sbr.rel (%p94) target = $region39
            $region38: #{encode_tree.1} parent=23 // pred_region
              loop: start=0, step=1, limit=1
              $region40: #{encode_tree.1} parent=38 // loop_pre_header
                _
              $region41: #{encode_tree.1} parent=38 // loop_header
                %s98 = sphi 0, %s102
                %p99 = scmp.ge.s32.totalorder %s98, 1
                %s103 = sphi %s4, %s4
                %s104 = sphi [#allocation3], [#allocation3]
              $region42: #{encode_tree.1} parent=38 // loop_header_branch
                %101 = sbr.rel (%p99) target = $region46
              $region43: #{encode_tree.1} parent=38 // loop_body
                %v105 = vld [vmem:[%s103] sm:$0xff]
                %106 = vst [vmem:[%s104] sm:$0xff] %v105
              $region44: #{encode_tree.1} parent=38 // loop_footer
                %s102 = sadd.s32 1, %s98
              $region45: #{encode_tree.1} parent=38 // loop_footer_branch
                %97 = sbr.rel target = $region41
              $region46: #{encode_tree.1} parent=38 // loop_exit
                _
            $region39: #{encode_tree.1} parent=23 // pred_fallthru
              _
            %p107 = pneg %p93
            // Predicated region
            $region47: #{encode_tree.1} parent=23 // pred_check
              _
            $region48: #{encode_tree.1} parent=23 // pred_check_branch
              %109 = sbr.rel (%p93) target = $region50
            $region49: #{encode_tree.1} parent=23 // pred_region
              %s110 = sand.u32 8, 7
            $region50: #{encode_tree.1} parent=23 // pred_fallthru
              _
          $region24: #{encode_tree.1} parent=15 // pred_fallthru
            _
          // Predicated region
          $region25: #{encode_tree.1} parent=15 // pred_check
            %p78 = pneg %p74
          $region26: #{encode_tree.1} parent=15 // pred_check_branch
            %80 = sbr.rel (%p78) target = $region28
          $region27: #{encode_tree.1} parent=15 // pred_region
            %s81 = sshllo.u32 0, 8
            loop: start=0, step=1, limit=1
            $region29: #{encode_tree.1} parent=27 // loop_pre_header
              _
            $region30: #{encode_tree.1} parent=27 // loop_header
              %s83 = sphi 0, %s87
              %p84 = scmp.ge.s32.totalorder %s83, 1
              %s88 = sphi %s4, %s4
              %s89 = sphi [#allocation3], [#allocation3]
            $region31: #{encode_tree.1} parent=27 // loop_header_branch
              %86 = sbr.rel (%p84) target = $region35
            $region32: #{encode_tree.1} parent=27 // loop_body
              %v90 = vld [vmem:[%s88] sm:%s81]
              %91 = vst [vmem:[%s89] sm:%s81] %v90
            $region33: #{encode_tree.1} parent=27 // loop_footer
              %s87 = sadd.s32 1, %s83
            $region34: #{encode_tree.1} parent=27 // loop_footer_branch
              %82 = sbr.rel target = $region30
            $region35: #{encode_tree.1} parent=27 // loop_exit
              _
          $region28: #{encode_tree.1} parent=15 // pred_fallthru
            _
          // Predicated region
          $region51: #{encode_tree.1} parent=15 // pred_check
            _
          $region52: #{encode_tree.1} parent=15 // pred_check_branch
            %113 = sbr.rel (0) target = $region54
          $region53: #{encode_tree.1} parent=15 // pred_region
            %114 = vsyncadd %s72, 128
          $region54: #{encode_tree.1} parent=15 // pred_fallthru
            _
          %s115 = smul.u32 4, 8
          %s116 = smul.u32 %s115, 32
          %s117 = smul.u32 %s116, 1
          %s118 = sshll.u32 %s117, 4
          %119 = dma.done [#allocation5], %s118
          %s120 = smul.u32 8, 1
          %s121 = sshll.u32 %s120, 4
          %122 = dma.done %s72, %s121
        $region16: #{encode_tree.1} parent=11 // pred_fallthru
          _
        %s123 = sld [smem:[#allocation7 + %s24]]
        %s124 = sld [smem:[#allocation8 + %s24]]
        %s125 = smul.u32 %s24, 16
        %s126 = sld [smem:[#allocation9 + %s125]]
        %s127 = scalar_lea.vmem [#allocation10], %s126
        %v128 = vld [vmem:[%s127] sm:$0x1]
        %129 = vst [vmem:[#allocation4] sm:$0x1] %v128
        %s130 = sadd.s32 %s125, 1
        %s131 = sld [smem:[#allocation9 + %s130]]
        %s132 = scalar_lea.vmem [#allocation10], %s131
        %v133 = vld [vmem:[%s132] sm:$0x1]
        %134 = vst [vmem:[#allocation4 + $0x8] sm:$0x1] %v133
        %s135 = smul.u32 %s24, 8
        %s136 = sadd.s32 %s135, 1
        %s137 = smul.u32 %s136, 2
        %s138 = sld [smem:[#allocation9 + %s137]]
        %s139 = scalar_lea.vmem [#allocation10], %s138
        %v140 = vld [vmem:[%s139] sm:$0x1]
        %141 = vst [vmem:[#allocation4 + $0x1] sm:$0x1] %v140
        %s142 = sadd.s32 %s137, 1
        %s143 = sld [smem:[#allocation9 + %s142]]
        %s144 = scalar_lea.vmem [#allocation10], %s143
        %v145 = vld [vmem:[%s144] sm:$0x1]
        %146 = vst [vmem:[#allocation4 + $0x9] sm:$0x1] %v145
        %s147 = sadd.s32 %s135, 2
        %s148 = smul.u32 %s147, 2
        %s149 = sld [smem:[#allocation9 + %s148]]
        %s150 = scalar_lea.vmem [#allocation10], %s149
        %v151 = vld [vmem:[%s150] sm:$0x1]
        %152 = vst [vmem:[#allocation4 + $0x2] sm:$0x1] %v151
        %s153 = sadd.s32 %s148, 1
        %s154 = sld [smem:[#allocation9 + %s153]]
        %s155 = scalar_lea.vmem [#allocation10], %s154
        %v156 = vld [vmem:[%s155] sm:$0x1]
        %157 = vst [vmem:[#allocation4 + $0xa] sm:$0x1] %v156
        %s158 = sadd.s32 %s135, 3
        %s159 = smul.u32 %s158, 2
        %s160 = sld [smem:[#allocation9 + %s159]]
        %s161 = scalar_lea.vmem [#allocation10], %s160
        %v162 = vld [vmem:[%s161] sm:$0x1]
        %163 = vst [vmem:[#allocation4 + $0x3] sm:$0x1] %v162
        %s164 = sadd.s32 %s159, 1
        %s165 = sld [smem:[#allocation9 + %s164]]
        %s166 = scalar_lea.vmem [#allocation10], %s165
        %v167 = vld [vmem:[%s166] sm:$0x1]
        %168 = vst [vmem:[#allocation4 + $0xb] sm:$0x1] %v167
        %s169 = sadd.s32 %s135, 4
        %s170 = smul.u32 %s169, 2
        %s171 = sld [smem:[#allocation9 + %s170]]
        %s172 = scalar_lea.vmem [#allocation10], %s171
        %v173 = vld [vmem:[%s172] sm:$0x1]
        %174 = vst [vmem:[#allocation4 + $0x4] sm:$0x1] %v173
        %s175 = sadd.s32 %s170, 1
        %s176 = sld [smem:[#allocation9 + %s175]]
        %s177 = scalar_lea.vmem [#allocation10], %s176
        %v178 = vld [vmem:[%s177] sm:$0x1]
        %179 = vst [vmem:[#allocation4 + $0xc] sm:$0x1] %v178
        %s180 = sadd.s32 %s135, 5
        %s181 = smul.u32 %s180, 2
        %s182 = sld [smem:[#allocation9 + %s181]]
        %s183 = scalar_lea.vmem [#allocation10], %s182
        %v184 = vld [vmem:[%s183] sm:$0x1]
        %185 = vst [vmem:[#allocation4 + $0x5] sm:$0x1] %v184
        %s186 = sadd.s32 %s181, 1
        %s187 = sld [smem:[#allocation9 + %s186]]
        %s188 = scalar_lea.vmem [#allocation10], %s187
        %v189 = vld [vmem:[%s188] sm:$0x1]
        %190 = vst [vmem:[#allocation4 + $0xd] sm:$0x1] %v189
        %s191 = sadd.s32 %s135, 6
        %s192 = smul.u32 %s191, 2
        %s193 = sld [smem:[#allocation9 + %s192]]
        %s194 = scalar_lea.vmem [#allocation10], %s193
        %v195 = vld [vmem:[%s194] sm:$0x1]
        %196 = vst [vmem:[#allocation4 + $0x6] sm:$0x1] %v195
        %s197 = sadd.s32 %s192, 1
        %s198 = sld [smem:[#allocation9 + %s197]]
        %s199 = scalar_lea.vmem [#allocation10], %s198
        %v200 = vld [vmem:[%s199] sm:$0x1]
        %201 = vst [vmem:[#allocation4 + $0xe] sm:$0x1] %v200
        %s202 = sadd.s32 %s135, 7
        %s203 = smul.u32 %s202, 2
        %s204 = sld [smem:[#allocation9 + %s203]]
        %s205 = scalar_lea.vmem [#allocation10], %s204
        %v206 = vld [vmem:[%s205] sm:$0x1]
        %207 = vst [vmem:[#allocation4 + $0x7] sm:$0x1] %v206
        %s208 = sadd.s32 %s203, 1
        %s209 = sld [smem:[#allocation9 + %s208]]
        %s210 = scalar_lea.vmem [#allocation10], %s209
        %v211 = vld [vmem:[%s210] sm:$0x1]
        %212 = vst [vmem:[#allocation4 + $0xf] sm:$0x1] %v211
        %s213 = smul.u32 %s123, 16
        %s214 = smul.addr %s213, 8
        %s215 = scalar_lea.vmem [#allocation2], %s214
        %v216 = vld [vmem:[%s215] sm:$0xff]
        %v217 = vld [vmem:[%s215 + $0x8] sm:$0xff]
        %v218 = vld [vmem:[%s215 + $0x10] sm:$0xff]
        %v219 = vld [vmem:[%s215 + $0x18] sm:$0xff]
        %v220 = vld [vmem:[%s215 + $0x20] sm:$0xff]
        %v221 = vld [vmem:[%s215 + $0x28] sm:$0xff]
        %v222 = vld [vmem:[%s215 + $0x30] sm:$0xff]
        %v223 = vld [vmem:[%s215 + $0x38] sm:$0xff]
        %v224 = vld [vmem:[%s215 + $0x40] sm:$0xff]
        %v225 = vld [vmem:[%s215 + $0x48] sm:$0xff]
        %v226 = vld [vmem:[%s215 + $0x50] sm:$0xff]
        %v227 = vld [vmem:[%s215 + $0x58] sm:$0xff]
        %v228 = vld [vmem:[%s215 + $0x60] sm:$0xff]
        %v229 = vld [vmem:[%s215 + $0x68] sm:$0xff]
        %v230 = vld [vmem:[%s215 + $0x70] sm:$0xff]
        %v231 = vld [vmem:[%s215 + $0x78] sm:$0xff]
        %v232 = vld [vmem:[#allocation4] sm:$0xff]
        %v233 = vld [vmem:[#allocation4 + $0x8] sm:$0xff]
        %v234 = vpack.c.bf16 %v232, %v232
        %v235 = vpack.c.bf16 %v233, %v233
        %s236 = scalar_lea.vmem [#allocation3], %s123
        %v237 = vld [vmem:[%s236] sm:$0x1]
        %v238 = vlaneseq
        %v239 = vshrl.u32 %v238, 7
        %v240 = vsub.s32 0, %v239
        %v241 = vrot.slane %v237, %v240
        %242 = vmatprep.subr.bf16.mxu0 0
        %243 = vmatpush1.bf16.msra.mxu0 %v216
        %244 = vmatprep.subr.bf16.mxu0 0
        %245 = vmatpush1.bf16.msra.mxu0 %v217
        %246 = vmatprep.subr.bf16.mxu0 0
        %247 = vmatpush1.bf16.msra.mxu0 %v218
        %248 = vmatprep.subr.bf16.mxu0 0
        %249 = vmatpush1.bf16.msra.mxu0 %v219
        %250 = vmatprep.subr.bf16.mxu0 0
        %251 = vmatpush1.bf16.msra.mxu0 %v220
        %252 = vmatprep.subr.bf16.mxu0 0
        %253 = vmatpush1.bf16.msra.mxu0 %v221
        %254 = vmatprep.subr.bf16.mxu0 0
        %255 = vmatpush1.bf16.msra.mxu0 %v222
        %256 = vmatprep.subr.bf16.mxu0 0
        %257 = vmatpush1.bf16.msra.mxu0 %v223
        %258 = vmatprep.subr.bf16.mxu0 0
        %259 = vmatpush1.bf16.msra.mxu0 %v224
        %260 = vmatprep.subr.bf16.mxu0 0
        %261 = vmatpush1.bf16.msra.mxu0 %v225
        %262 = vmatprep.subr.bf16.mxu0 0
        %263 = vmatpush1.bf16.msra.mxu0 %v226
        %264 = vmatprep.subr.bf16.mxu0 0
        %265 = vmatpush1.bf16.msra.mxu0 %v227
        %266 = vmatprep.subr.bf16.mxu0 0
        %267 = vmatpush1.bf16.msra.mxu0 %v228
        %268 = vmatprep.subr.bf16.mxu0 0
        %269 = vmatpush1.bf16.msra.mxu0 %v229
        %270 = vmatprep.subr.bf16.mxu0 0
        %271 = vmatpush1.bf16.msra.mxu0 %v230
        %272 = vmatprep.subr.bf16.mxu0 0
        %273 = vmatpush1.bf16.msra.mxu0 %v231
        %274 = vmatprep.mubr.bf16.mxu0 %v235
        %275 = vmatmul.mubr.bf16.gmra.mrb[0].mxu0 %v234
        %v276 = vpop.f32.mrb[0].mxu0
        %v277 = vadd.f32 %v241, %v276
        %v278 = vpop.f32.mrb[0].mxu0
        %v279 = vpop.f32.mrb[0].mxu0
        %v280 = vpop.f32.mrb[0].mxu0
        %281 = vdwg.mxu0
        %v282 = vtanh.pop %v277
        %s283 = scalar_lea.vmem [#allocation10], %s124
        %284 = vst [vmem:[%s283] sm:$0xff] %v282
        // Predicated region
        $region55: #{encode_tree.1} parent=11 // pred_check
          %p285 = pneg %p34
        $region56: #{encode_tree.1} parent=11 // pred_check_branch
          %287 = sbr.rel (%p285) target = $region58
        $region57: #{encode_tree.1} parent=11 // pred_region
          %s289 = ssub.s32 640, 640
          %290 = vsyncadd [#allocation11], %s289
          %s291 = sshll.u32 [#allocation10], 4
          %s292 = int_to_ptr.vmem [resolvable:$true] %s291
          %297 = dma.vmem_to_hbm [thread:$0]  %s292, 640, %s5, [#allocation11], 128, 128, 8
        $region58: #{encode_tree.1} parent=11 // pred_fallthru
          _
        // Predicated region
        $region59: #{encode_tree.1} parent=11 // pred_check
          %p298 = pneg %p34
        $region60: #{encode_tree.1} parent=11 // pred_check_branch
          %300 = sbr.rel (%p298) target = $region62
        $region61: #{encode_tree.1} parent=11 // pred_region
          %301 = dma.done [#allocation11], 640
        $region62: #{encode_tree.1} parent=11 // pred_fallthru
          _
      $region12: #{encode_tree.1} parent=5 // pred_fallthru
        _
      %p302 = scmp.le.s32.totalorder 1, %s24
      // Predicated region
      $region63: #{encode_tree.1} parent=5 // pred_check
        %p303 = pneg %p302
      $region64: #{encode_tree.1} parent=5 // pred_check_branch
        %305 = sbr.rel (%p303) target = $region66
      $region65: #{encode_tree.1} parent=5 // pred_region
        %s306 = ssub.s32 %s24, 1
      $region66: #{encode_tree.1} parent=5 // pred_fallthru
        _
    $region6: #{encode_tree.1} parent=1 // loop_footer
      %s28 = sadd.s32 1, %s24
    $region7: #{encode_tree.1} parent=1 // loop_footer_branch
      %23 = sbr.rel target = $region3
    $region8: #{encode_tree.1} parent=1 // loop_exit
      _
    %307 = vsyncpa [#allocation11], 1
    %s308 = scalar_lea.sflag [#allocation11], 1
    %309 = vsyncpa %s308, 1
  %310 = vsyncmov [#allocation5]
  %s311 = vpop.sfrf %310
  %p312 = scmp.eq.s32.totalorder %s311, 0
  %p313 = pneg %p312
  %315 = shalt.err (%p313)
  %s316 = scalar_lea.sflag [#allocation5], 1
  %317 = vsyncmov %s316
  %s318 = vpop.sfrf %317
  %p319 = scmp.eq.s32.totalorder %s318, 0
  %p320 = pneg %p319
  %322 = shalt.err (%p320)

</llo_original>
